<compile_context>
chip_gen: v7x
topology: tpu7x:2x2x1
jax: 0.10.0
libtpu: 0.0.40
codegen_flags: <defaults>
</compile_context>

<pallas_src>
import functools

import jax
import jax.numpy as jnp
from jax.experimental import pallas as pl
from jax.experimental.pallas import tpu as pltpu


# ---------------------------------------------------------------------------
# Pallas kernel
# ---------------------------------------------------------------------------
def patch_embed_kernel(p_ref, w_ref, b_ref, pos_ref, o_ref):
    """p_ref: (B, N, P) bf16 | w_ref: (P, H) bf16 | b_ref: (1, H) f32
    pos_ref: (1, N, H) f32 | o_ref: (B, N, H) f32

    Batch is folded into the matmul M dimension so the MXU runs one
    (B*N, P) x (P, H) contraction instead of B tiny ones.
    """
    B, N, P = p_ref.shape
    H = w_ref.shape[1]

    p = p_ref[...].reshape(B * N, P)          # leading-dim merge only: no lane shuffle
    emb = jnp.dot(p, w_ref[...], preferred_element_type=jnp.float32)   # f32 MXU accum
    emb = emb + b_ref[...]                    # (1, H) broadcast  (conv bias)
    o_ref[...] = emb.reshape(B, N, H) + pos_ref[...]   # (1, N, H) broadcast over batch


# ---------------------------------------------------------------------------
# Host-side glue
# ---------------------------------------------------------------------------
def patchify(x, patch_size, order="conv"):
    """NC(D1)(D2)(D3) -> (B, n_patches, patch_dim).

    order="conv":       per-patch element order [c, k1, k2, k3]  (matches the
                        Conv3d weight flattened as (hidden, c*k1*k2*k3)).
    order="perceptron": per-patch element order [k1, k2, k3, c]  (matches the
                        einops Rearrange used by the perceptron embedding).
    """
    B, C, S1, S2, S3 = x.shape
    p1, p2, p3 = patch_size
    g1, g2, g3 = S1 // p1, S2 // p2, S3 // p3
    x = x.reshape(B, C, g1, p1, g2, p2, g3, p3)
    if order == "conv":
        x = x.transpose(0, 2, 4, 6, 1, 3, 5, 7)   # (B, g1, g2, g3, C, p1, p2, p3)
    else:  # perceptron
        x = x.transpose(0, 2, 4, 6, 3, 5, 7, 1)   # (B, g1, g2, g3, p1, p2, p3, C)
    return x.reshape(B, g1 * g2 * g3, C * p1 * p2 * p3)


def _full_spec(shape):
    nd = len(shape)
    return pl.BlockSpec(shape, lambda i, _nd=nd: (0,) * _nd)


def patch_embedding_block(x, params, *, patch_size, patch_embed="conv"):
    """Forward of PatchEmbeddingBlock: returns (B, n_patches, hidden_size) f32."""
    patches = patchify(x, patch_size, order=patch_embed).astype(jnp.bfloat16)
    B, N, P = patches.shape
    H = params["w_patch"].shape[1]

    out = pl.pallas_call(
        patch_embed_kernel,
        out_shape=jax.ShapeDtypeStruct((B, N, H), jnp.float32),
        grid=(1,),  # single program: whole problem is VMEM resident
        in_specs=[
            _full_spec((B, N, P)),
            _full_spec(params["w_patch"].shape),
            _full_spec(params["b_patch"].shape),
            _full_spec(params["pos_embed"].shape),
        ],
        out_specs=_full_spec((B, N, H)),
        compiler_params=pltpu.CompilerParams(dimension_semantics=("arbitrary",)),
    )(patches, params["w_patch"], params["b_patch"], params["pos_embed"])
    # Dropout(rate=0.0) is the identity -> omitted.
    return out


# ---------------------------------------------------------------------------
# Deterministic synthetic parameters (shapes as in PatchEmbeddingBlock.__init__)
# ---------------------------------------------------------------------------
def init_patch_embed_params(key, *, in_chans, patch_size, hidden_size, n_patches):
    patch_dim = in_chans * patch_size[0] * patch_size[1] * patch_size[2]
    k_w, k_pos = jax.random.split(key)
    # Conv3d weight (H, C, k1, k2, k3) flattened & transposed -> (patch_dim, H).
    w = 0.02 * jax.random.normal(k_w, (patch_dim, hidden_size), jnp.float32)
    pos = 0.02 * jax.random.normal(k_pos, (1, n_patches, hidden_size), jnp.float32)
    return {
        "w_patch": w.astype(jnp.bfloat16),                  # bf16 for the MXU
        "b_patch": jnp.zeros((1, hidden_size), jnp.float32),
        "pos_embed": pos,                                    # learnable pos embed (f32)
    }


# ---------------------------------------------------------------------------
if __name__ == "__main__":
    # Config consistent with the module (spatial_dims=3 default):
    #   PatchEmbeddingBlock(in_channels=4, img_size=16, patch_size=8,
    #                       hidden_size=32, num_heads=4, patch_embed="conv",
    #                       pos_embed="learnable", dropout_rate=0.0)
    B = 2
    in_chans = 4
    img_size = (16, 16, 16)
    patch_size = (8, 8, 8)
    hidden_size = 32
    grid_size = tuple(s // p for s, p in zip(img_size, patch_size))
    n_patches = grid_size[0] * grid_size[1] * grid_size[2]   # 8

    root = jax.random.PRNGKey(0)
    k_x, k_p = jax.random.split(root)
    x = jax.random.normal(k_x, (B, in_chans) + img_size, jnp.float32)   # NCDHW

    params = init_patch_embed_params(
        k_p, in_chans=in_chans, patch_size=patch_size,
        hidden_size=hidden_size, n_patches=n_patches,
    )

    fwd = jax.jit(functools.partial(patch_embedding_block, patch_size=patch_size))
    emb = fwd(x, params)
    jax.block_until_ready(emb)
    assert emb.shape == (B, n_patches, hidden_size)

    # Pure-JAX reference (same bf16 inputs, f32 accumulation) for a sanity check.
    pch = patchify(x, patch_size, order="conv").astype(jnp.bfloat16)
    ref = (
        jnp.einsum("bnp,ph->bnh", pch, params["w_patch"],
                   preferred_element_type=jnp.float32)
        + params["b_patch"][None]
        + params["pos_embed"]
    )
    assert jnp.max(jnp.abs(emb - ref)) < 2e-2, "mismatch vs reference"

    print("KERNEL_OK")
</pallas_src>

<mosaic_0001>
module attributes {stable_mosaic.version = 11 : i64} {
  func.func @patch_embed_kernel(%arg0: i32, %arg1: memref<2x8x2048xbf16, #tpu.memory_space<vmem>>, %arg2: memref<2048x32xbf16, #tpu.memory_space<vmem>>, %arg3: memref<1x32xf32, #tpu.memory_space<vmem>>, %arg4: memref<1x8x32xf32, #tpu.memory_space<vmem>>, %arg5: memref<2x8x32xf32, #tpu.memory_space<vmem>>) attributes {dimension_semantics = [#tpu.dimension_semantics<arbitrary>], iteration_bounds = array<i64: 1>, scalar_prefetch = 0 : i64, scratch_operands = 0 : i64, tpu.core_type = #tpu.core_type<tc>, window_params = [{pipeline_mode = #tpu.pipeline_mode<synchronous>, transform_indices = @transform_0, window_bounds = array<i64: 2, 8, 2048>}, {pipeline_mode = #tpu.pipeline_mode<synchronous>, transform_indices = @transform_1, window_bounds = array<i64: 2048, 32>}, {pipeline_mode = #tpu.pipeline_mode<synchronous>, transform_indices = @transform_2, window_bounds = array<i64: 1, 32>}, {pipeline_mode = #tpu.pipeline_mode<synchronous>, transform_indices = @transform_3, window_bounds = array<i64: 1, 8, 32>}, {pipeline_mode = #tpu.pipeline_mode<synchronous>, transform_indices = @transform_4, window_bounds = array<i64: 2, 8, 32>}]} {
    %c0 = arith.constant 0 : index
    %c0_0 = arith.constant 0 : index
    %c0_1 = arith.constant 0 : index
    %0 = vector.load %arg1[%c0, %c0_0, %c0_1] : memref<2x8x2048xbf16, #tpu.memory_space<vmem>>, vector<2x8x2048xbf16>
    %1 = vector.shape_cast %0 : vector<2x8x2048xbf16> to vector<16x2048xbf16>
    %c0_2 = arith.constant 0 : index
    %c0_3 = arith.constant 0 : index
    %2 = vector.load %arg2[%c0_2, %c0_3] : memref<2048x32xbf16, #tpu.memory_space<vmem>>, vector<2048x32xbf16>
    %cst = arith.constant dense<0.000000e+00> : vector<16x32xf32>
    %3 = tpu.matmul %1, %2, %cst {dimension_numbers = #tpu.dot_dimension_numbers<[1], [0], [0], [1], [0, 0, 1, 1], [], []>} : vector<16x2048xbf16>, vector<2048x32xbf16>, vector<16x32xf32> -> vector<16x32xf32>
    %c0_4 = arith.constant 0 : index
    %c0_5 = arith.constant 0 : index
    %4 = vector.load %arg3[%c0_4, %c0_5] : memref<1x32xf32, #tpu.memory_space<vmem>>, vector<1x32xf32>
    %5 = vector.broadcast %4 : vector<1x32xf32> to vector<16x32xf32>
    %6 = arith.addf %3, %5 : vector<16x32xf32>
    %7 = vector.shape_cast %6 : vector<16x32xf32> to vector<2x8x32xf32>
    %c0_6 = arith.constant 0 : index
    %c0_7 = arith.constant 0 : index
    %c0_8 = arith.constant 0 : index
    %8 = vector.load %arg4[%c0_6, %c0_7, %c0_8] : memref<1x8x32xf32, #tpu.memory_space<vmem>>, vector<1x8x32xf32>
    %9 = vector.broadcast %8 : vector<1x8x32xf32> to vector<2x8x32xf32>
    %10 = arith.addf %7, %9 : vector<2x8x32xf32>
    %c0_9 = arith.constant 0 : index
    %c0_10 = arith.constant 0 : index
    %c0_11 = arith.constant 0 : index
    %11 = vector.load %arg5[%c0_9, %c0_10, %c0_11] : memref<2x8x32xf32, #tpu.memory_space<vmem>>, vector<2x8x32xf32>
    tpu.vector_store %arg5[%c0_9, %c0_10, %c0_11], %10 {strides = array<i32>} : memref<2x8x32xf32, #tpu.memory_space<vmem>>, vector<2x8x32xf32>,
    return
  }
  func.func @transform_0(%arg0: i32) -> (i32, i32, i32) {
    %c0_i32 = arith.constant 0 : i32
    %c0_i32_0 = arith.constant 0 : i32
    %c0_i32_1 = arith.constant 0 : i32
    %c0_i32_2 = arith.constant 0 : i32
    return %c0_i32, %c0_i32_0, %c0_i32_1 : i32, i32, i32
  }
  func.func @transform_1(%arg0: i32) -> (i32, i32) {
    %c0_i32 = arith.constant 0 : i32
    %c0_i32_0 = arith.constant 0 : i32
    %c0_i32_1 = arith.constant 0 : i32
    return %c0_i32, %c0_i32_0 : i32, i32
  }
  func.func @transform_2(%arg0: i32) -> (i32, i32) {
    %c0_i32 = arith.constant 0 : i32
    %c0_i32_0 = arith.constant 0 : i32
    %c0_i32_1 = arith.constant 0 : i32
    return %c0_i32, %c0_i32_0 : i32, i32
  }
  func.func @transform_3(%arg0: i32) -> (i32, i32, i32) {
    %c0_i32 = arith.constant 0 : i32
    %c0_i32_0 = arith.constant 0 : i32
    %c0_i32_1 = arith.constant 0 : i32
    %c0_i32_2 = arith.constant 0 : i32
    return %c0_i32, %c0_i32_0, %c0_i32_1 : i32, i32, i32
  }
  func.func @transform_4(%arg0: i32) -> (i32, i32, i32) {
    %c0_i32 = arith.constant 0 : i32
    %c0_i32_0 = arith.constant 0 : i32
    %c0_i32_1 = arith.constant 0 : i32
    %c0_i32_2 = arith.constant 0 : i32
    return %c0_i32, %c0_i32_0, %c0_i32_1 : i32, i32, i32
  }
}

</mosaic_0001>

<llo_original>
// kernel: patch_embedding_block.1
$region0: #{patch_embedding_block.1}
  #allocation0 [shape = 'u32[]', space=smem, size = 0x4, offset = 0x4, fixed_abs, tag = 'smem constant byte address 0x4 - core index']
  #allocation1 [shape = 'u32[144,128]{1,0:T(1,128)}', space=vmem, size = 0x12000, scoped, tag = 'internal scratch']
  %s0 = inlined_call_operand.vmem [shape: bf16[2,8,2048], index: 0, kind: input, shape index: {}]
  %s1 = inlined_call_operand.vmem [shape: bf16[2048,32], index: 1, kind: input, shape index: {}]
  %s2 = inlined_call_operand.vmem [shape: f32[1,32], index: 2, kind: input, shape index: {}]
  %s3 = inlined_call_operand.vmem [shape: f32[1,8,32], index: 3, kind: input, shape index: {}]
  %s4 = inlined_call_operand.hbm [shape: f32[2,8,32], index: 4, kind: output, shape index: {}]
  %s5 = sld [smem:[#allocation0]]
  $region26: #{patch_embedding_block.1} parent=0
    _
  %s7 = ssub.s32 1, %s5
  %s8 = scalar_select 0, %s7, %s5
  $region1: #{patch_embedding_block.1} parent=0
    #allocation2 [shape = 'u8[8192]{0}', space=vmem, size = 0x2000, scoped, tag = 'output window, operand 0, single buffered']
    #allocation3 [shape = 's32[1]{0}', space=sflag, size = 0x4, scoped, tag = 'scoped memory for patch_embedding_block.1']
    %9 = vsyncpa [#allocation3], 0
    // Predicated region
    $region2: #{patch_embedding_block.1} parent=1 // pred_check
      _
    $region3: #{patch_embedding_block.1} parent=1 // pred_check_branch
      %11 = sbr.rel (0) target = $region5
    $region4: #{patch_embedding_block.1} parent=1 // pred_region
      _
    $region5: #{patch_embedding_block.1} parent=1 // pred_fallthru
      _
    // Predicated region
    $region6: #{patch_embedding_block.1} parent=1 // pred_check
      _
    $region7: #{patch_embedding_block.1} parent=1 // pred_check_branch
      %13 = sbr.rel (0) target = $region9
    $region8: #{patch_embedding_block.1} parent=1 // pred_region
      _
    $region9: #{patch_embedding_block.1} parent=1 // pred_fallthru
      _
    // Predicated region
    $region10: #{patch_embedding_block.1} parent=1 // pred_check
      _
    $region11: #{patch_embedding_block.1} parent=1 // pred_check_branch
      %15 = sbr.rel (0) target = $region13
    $region12: #{patch_embedding_block.1} parent=1 // pred_region
      _
    $region13: #{patch_embedding_block.1} parent=1 // pred_fallthru
      _
    // Predicated region
    $region14: #{patch_embedding_block.1} parent=1 // pred_check
      _
    $region15: #{patch_embedding_block.1} parent=1 // pred_check_branch
      %17 = sbr.rel (0) target = $region17
    $region16: #{patch_embedding_block.1} parent=1 // pred_region
      _
    $region17: #{patch_embedding_block.1} parent=1 // pred_fallthru
      _
    %v19 = vld [vmem:[%s0] sm:$0xff]
    %v20 = vld [vmem:[%s0 + $0x8] sm:$0xff]
    %v21 = vld [vmem:[%s0 + $0x10] sm:$0xff]
    %v22 = vld [vmem:[%s0 + $0x18] sm:$0xff]
    %v23 = vld [vmem:[%s0 + $0x20] sm:$0xff]
    %v24 = vld [vmem:[%s0 + $0x28] sm:$0xff]
    %v25 = vld [vmem:[%s0 + $0x30] sm:$0xff]
    %v26 = vld [vmem:[%s0 + $0x38] sm:$0xff]
    %v27 = vld [vmem:[%s0 + $0x40] sm:$0xff]
    %v28 = vld [vmem:[%s0 + $0x48] sm:$0xff]
    %v29 = vld [vmem:[%s0 + $0x50] sm:$0xff]
    %v30 = vld [vmem:[%s0 + $0x58] sm:$0xff]
    %v31 = vld [vmem:[%s0 + $0x60] sm:$0xff]
    %v32 = vld [vmem:[%s0 + $0x68] sm:$0xff]
    %v33 = vld [vmem:[%s0 + $0x70] sm:$0xff]
    %v34 = vld [vmem:[%s0 + $0x78] sm:$0xff]
    %v35 = vld [vmem:[%s1] sm:$0xf]
    %v36 = vld [vmem:[%s1 + $0x4] sm:$0xf]
    %v37 = vld [vmem:[%s1 + $0x8] sm:$0xf]
    %v38 = vld [vmem:[%s1 + $0xc] sm:$0xf]
    %v39 = vld [vmem:[%s1 + $0x10] sm:$0xf]
    %v40 = vld [vmem:[%s1 + $0x14] sm:$0xf]
    %v41 = vld [vmem:[%s1 + $0x18] sm:$0xf]
    %v42 = vld [vmem:[%s1 + $0x1c] sm:$0xf]
    %v43 = vld [vmem:[%s1 + $0x20] sm:$0xf]
    %v44 = vld [vmem:[%s1 + $0x24] sm:$0xf]
    %v45 = vld [vmem:[%s1 + $0x28] sm:$0xf]
    %v46 = vld [vmem:[%s1 + $0x2c] sm:$0xf]
    %v47 = vld [vmem:[%s1 + $0x30] sm:$0xf]
    %v48 = vld [vmem:[%s1 + $0x34] sm:$0xf]
    %v49 = vld [vmem:[%s1 + $0x38] sm:$0xf]
    %v50 = vld [vmem:[%s1 + $0x3c] sm:$0xf]
    %v51 = vld [vmem:[%s1 + $0x40] sm:$0xf]
    %v52 = vld [vmem:[%s1 + $0x44] sm:$0xf]
    %v53 = vld [vmem:[%s1 + $0x48] sm:$0xf]
    %v54 = vld [vmem:[%s1 + $0x4c] sm:$0xf]
    %v55 = vld [vmem:[%s1 + $0x50] sm:$0xf]
    %v56 = vld [vmem:[%s1 + $0x54] sm:$0xf]
    %v57 = vld [vmem:[%s1 + $0x58] sm:$0xf]
    %v58 = vld [vmem:[%s1 + $0x5c] sm:$0xf]
    %v59 = vld [vmem:[%s1 + $0x60] sm:$0xf]
    %v60 = vld [vmem:[%s1 + $0x64] sm:$0xf]
    %v61 = vld [vmem:[%s1 + $0x68] sm:$0xf]
    %v62 = vld [vmem:[%s1 + $0x6c] sm:$0xf]
    %v63 = vld [vmem:[%s1 + $0x70] sm:$0xf]
    %v64 = vld [vmem:[%s1 + $0x74] sm:$0xf]
    %v65 = vld [vmem:[%s1 + $0x78] sm:$0xf]
    %v66 = vld [vmem:[%s1 + $0x7c] sm:$0xf]
    %v67 = vld [vmem:[%s1 + $0x80] sm:$0xf]
    %v68 = vld [vmem:[%s1 + $0x84] sm:$0xf]
    %v69 = vld [vmem:[%s1 + $0x88] sm:$0xf]
    %v70 = vld [vmem:[%s1 + $0x8c] sm:$0xf]
    %v71 = vld [vmem:[%s1 + $0x90] sm:$0xf]
    %v72 = vld [vmem:[%s1 + $0x94] sm:$0xf]
    %v73 = vld [vmem:[%s1 + $0x98] sm:$0xf]
    %v74 = vld [vmem:[%s1 + $0x9c] sm:$0xf]
    %v75 = vld [vmem:[%s1 + $0xa0] sm:$0xf]
    %v76 = vld [vmem:[%s1 + $0xa4] sm:$0xf]
    %v77 = vld [vmem:[%s1 + $0xa8] sm:$0xf]
    %v78 = vld [vmem:[%s1 + $0xac] sm:$0xf]
    %v79 = vld [vmem:[%s1 + $0xb0] sm:$0xf]
    %v80 = vld [vmem:[%s1 + $0xb4] sm:$0xf]
    %v81 = vld [vmem:[%s1 + $0xb8] sm:$0xf]
    %v82 = vld [vmem:[%s1 + $0xbc] sm:$0xf]
    %v83 = vld [vmem:[%s1 + $0xc0] sm:$0xf]
    %v84 = vld [vmem:[%s1 + $0xc4] sm:$0xf]
    %v85 = vld [vmem:[%s1 + $0xc8] sm:$0xf]
    %v86 = vld [vmem:[%s1 + $0xcc] sm:$0xf]
    %v87 = vld [vmem:[%s1 + $0xd0] sm:$0xf]
    %v88 = vld [vmem:[%s1 + $0xd4] sm:$0xf]
    %v89 = vld [vmem:[%s1 + $0xd8] sm:$0xf]
    %v90 = vld [vmem:[%s1 + $0xdc] sm:$0xf]
    %v91 = vld [vmem:[%s1 + $0xe0] sm:$0xf]
    %v92 = vld [vmem:[%s1 + $0xe4] sm:$0xf]
    %v93 = vld [vmem:[%s1 + $0xe8] sm:$0xf]
    %v94 = vld [vmem:[%s1 + $0xec] sm:$0xf]
    %v95 = vld [vmem:[%s1 + $0xf0] sm:$0xf]
    %v96 = vld [vmem:[%s1 + $0xf4] sm:$0xf]
    %v97 = vld [vmem:[%s1 + $0xf8] sm:$0xf]
    %v98 = vld [vmem:[%s1 + $0xfc] sm:$0xf]
    %v99 = vld [vmem:[%s1 + $0x100] sm:$0xf]
    %v100 = vld [vmem:[%s1 + $0x104] sm:$0xf]
    %v101 = vld [vmem:[%s1 + $0x108] sm:$0xf]
    %v102 = vld [vmem:[%s1 + $0x10c] sm:$0xf]
    %v103 = vld [vmem:[%s1 + $0x110] sm:$0xf]
    %v104 = vld [vmem:[%s1 + $0x114] sm:$0xf]
    %v105 = vld [vmem:[%s1 + $0x118] sm:$0xf]
    %v106 = vld [vmem:[%s1 + $0x11c] sm:$0xf]
    %v107 = vld [vmem:[%s1 + $0x120] sm:$0xf]
    %v108 = vld [vmem:[%s1 + $0x124] sm:$0xf]
    %v109 = vld [vmem:[%s1 + $0x128] sm:$0xf]
    %v110 = vld [vmem:[%s1 + $0x12c] sm:$0xf]
    %v111 = vld [vmem:[%s1 + $0x130] sm:$0xf]
    %v112 = vld [vmem:[%s1 + $0x134] sm:$0xf]
    %v113 = vld [vmem:[%s1 + $0x138] sm:$0xf]
    %v114 = vld [vmem:[%s1 + $0x13c] sm:$0xf]
    %v115 = vld [vmem:[%s1 + $0x140] sm:$0xf]
    %v116 = vld [vmem:[%s1 + $0x144] sm:$0xf]
    %v117 = vld [vmem:[%s1 + $0x148] sm:$0xf]
    %v118 = vld [vmem:[%s1 + $0x14c] sm:$0xf]
    %v119 = vld [vmem:[%s1 + $0x150] sm:$0xf]
    %v120 = vld [vmem:[%s1 + $0x154] sm:$0xf]
    %v121 = vld [vmem:[%s1 + $0x158] sm:$0xf]
    %v122 = vld [vmem:[%s1 + $0x15c] sm:$0xf]
    %v123 = vld [vmem:[%s1 + $0x160] sm:$0xf]
    %v124 = vld [vmem:[%s1 + $0x164] sm:$0xf]
    %v125 = vld [vmem:[%s1 + $0x168] sm:$0xf]
    %v126 = vld [vmem:[%s1 + $0x16c] sm:$0xf]
    %v127 = vld [vmem:[%s1 + $0x170] sm:$0xf]
    %v128 = vld [vmem:[%s1 + $0x174] sm:$0xf]
    %v129 = vld [vmem:[%s1 + $0x178] sm:$0xf]
    %v130 = vld [vmem:[%s1 + $0x17c] sm:$0xf]
    %v131 = vld [vmem:[%s1 + $0x180] sm:$0xf]
    %v132 = vld [vmem:[%s1 + $0x184] sm:$0xf]
    %v133 = vld [vmem:[%s1 + $0x188] sm:$0xf]
    %v134 = vld [vmem:[%s1 + $0x18c] sm:$0xf]
    %v135 = vld [vmem:[%s1 + $0x190] sm:$0xf]
    %v136 = vld [vmem:[%s1 + $0x194] sm:$0xf]
    %v137 = vld [vmem:[%s1 + $0x198] sm:$0xf]
    %v138 = vld [vmem:[%s1 + $0x19c] sm:$0xf]
    %v139 = vld [vmem:[%s1 + $0x1a0] sm:$0xf]
    %v140 = vld [vmem:[%s1 + $0x1a4] sm:$0xf]
    %v141 = vld [vmem:[%s1 + $0x1a8] sm:$0xf]
    %v142 = vld [vmem:[%s1 + $0x1ac] sm:$0xf]
    %v143 = vld [vmem:[%s1 + $0x1b0] sm:$0xf]
    %v144 = vld [vmem:[%s1 + $0x1b4] sm:$0xf]
    %v145 = vld [vmem:[%s1 + $0x1b8] sm:$0xf]
    %v146 = vld [vmem:[%s1 + $0x1bc] sm:$0xf]
    %v147 = vld [vmem:[%s1 + $0x1c0] sm:$0xf]
    %v148 = vld [vmem:[%s1 + $0x1c4] sm:$0xf]
    %v149 = vld [vmem:[%s1 + $0x1c8] sm:$0xf]
    %v150 = vld [vmem:[%s1 + $0x1cc] sm:$0xf]
    %v151 = vld [vmem:[%s1 + $0x1d0] sm:$0xf]
    %v152 = vld [vmem:[%s1 + $0x1d4] sm:$0xf]
    %v153 = vld [vmem:[%s1 + $0x1d8] sm:$0xf]
    %v154 = vld [vmem:[%s1 + $0x1dc] sm:$0xf]
    %v155 = vld [vmem:[%s1 + $0x1e0] sm:$0xf]
    %v156 = vld [vmem:[%s1 + $0x1e4] sm:$0xf]
    %v157 = vld [vmem:[%s1 + $0x1e8] sm:$0xf]
    %v158 = vld [vmem:[%s1 + $0x1ec] sm:$0xf]
    %v159 = vld [vmem:[%s1 + $0x1f0] sm:$0xf]
    %v160 = vld [vmem:[%s1 + $0x1f4] sm:$0xf]
    %v161 = vld [vmem:[%s1 + $0x1f8] sm:$0xf]
    %v162 = vld [vmem:[%s1 + $0x1fc] sm:$0xf]
    %v163 = vld [vmem:[%s1 + $0x200] sm:$0xf]
    %v164 = vld [vmem:[%s1 + $0x204] sm:$0xf]
    %v165 = vld [vmem:[%s1 + $0x208] sm:$0xf]
    %v166 = vld [vmem:[%s1 + $0x20c] sm:$0xf]
    %v167 = vld [vmem:[%s1 + $0x210] sm:$0xf]
    %v168 = vld [vmem:[%s1 + $0x214] sm:$0xf]
    %v169 = vld [vmem:[%s1 + $0x218] sm:$0xf]
    %v170 = vld [vmem:[%s1 + $0x21c] sm:$0xf]
    %v171 = vld [vmem:[%s1 + $0x220] sm:$0xf]
    %v172 = vld [vmem:[%s1 + $0x224] sm:$0xf]
    %v173 = vld [vmem:[%s1 + $0x228] sm:$0xf]
    %v174 = vld [vmem:[%s1 + $0x22c] sm:$0xf]
    %v175 = vld [vmem:[%s1 + $0x230] sm:$0xf]
    %v176 = vld [vmem:[%s1 + $0x234] sm:$0xf]
    %v177 = vld [vmem:[%s1 + $0x238] sm:$0xf]
    %v178 = vld [vmem:[%s1 + $0x23c] sm:$0xf]
    %v179 = vld [vmem:[%s1 + $0x240] sm:$0xf]
    %v180 = vld [vmem:[%s1 + $0x244] sm:$0xf]
    %v181 = vld [vmem:[%s1 + $0x248] sm:$0xf]
    %v182 = vld [vmem:[%s1 + $0x24c] sm:$0xf]
    %v183 = vld [vmem:[%s1 + $0x250] sm:$0xf]
    %v184 = vld [vmem:[%s1 + $0x254] sm:$0xf]
    %v185 = vld [vmem:[%s1 + $0x258] sm:$0xf]
    %v186 = vld [vmem:[%s1 + $0x25c] sm:$0xf]
    %v187 = vld [vmem:[%s1 + $0x260] sm:$0xf]
    %v188 = vld [vmem:[%s1 + $0x264] sm:$0xf]
    %v189 = vld [vmem:[%s1 + $0x268] sm:$0xf]
    %v190 = vld [vmem:[%s1 + $0x26c] sm:$0xf]
    %v191 = vld [vmem:[%s1 + $0x270] sm:$0xf]
    %v192 = vld [vmem:[%s1 + $0x274] sm:$0xf]
    %v193 = vld [vmem:[%s1 + $0x278] sm:$0xf]
    %v194 = vld [vmem:[%s1 + $0x27c] sm:$0xf]
    %v195 = vld [vmem:[%s1 + $0x280] sm:$0xf]
    %v196 = vld [vmem:[%s1 + $0x284] sm:$0xf]
    %v197 = vld [vmem:[%s1 + $0x288] sm:$0xf]
    %v198 = vld [vmem:[%s1 + $0x28c] sm:$0xf]
    %v199 = vld [vmem:[%s1 + $0x290] sm:$0xf]
    %v200 = vld [vmem:[%s1 + $0x294] sm:$0xf]
    %v201 = vld [vmem:[%s1 + $0x298] sm:$0xf]
    %v202 = vld [vmem:[%s1 + $0x29c] sm:$0xf]
    %v203 = vld [vmem:[%s1 + $0x2a0] sm:$0xf]
    %v204 = vld [vmem:[%s1 + $0x2a4] sm:$0xf]
    %v205 = vld [vmem:[%s1 + $0x2a8] sm:$0xf]
    %v206 = vld [vmem:[%s1 + $0x2ac] sm:$0xf]
    %v207 = vld [vmem:[%s1 + $0x2b0] sm:$0xf]
    %v208 = vld [vmem:[%s1 + $0x2b4] sm:$0xf]
    %v209 = vld [vmem:[%s1 + $0x2b8] sm:$0xf]
    %v210 = vld [vmem:[%s1 + $0x2bc] sm:$0xf]
    %v211 = vld [vmem:[%s1 + $0x2c0] sm:$0xf]
    %v212 = vld [vmem:[%s1 + $0x2c4] sm:$0xf]
    %v213 = vld [vmem:[%s1 + $0x2c8] sm:$0xf]
    %v214 = vld [vmem:[%s1 + $0x2cc] sm:$0xf]
    %v215 = vld [vmem:[%s1 + $0x2d0] sm:$0xf]
    %v216 = vld [vmem:[%s1 + $0x2d4] sm:$0xf]
    %v217 = vld [vmem:[%s1 + $0x2d8] sm:$0xf]
    %v218 = vld [vmem:[%s1 + $0x2dc] sm:$0xf]
    %v219 = vld [vmem:[%s1 + $0x2e0] sm:$0xf]
    %v220 = vld [vmem:[%s1 + $0x2e4] sm:$0xf]
    %v221 = vld [vmem:[%s1 + $0x2e8] sm:$0xf]
    %v222 = vld [vmem:[%s1 + $0x2ec] sm:$0xf]
    %v223 = vld [vmem:[%s1 + $0x2f0] sm:$0xf]
    %v224 = vld [vmem:[%s1 + $0x2f4] sm:$0xf]
    %v225 = vld [vmem:[%s1 + $0x2f8] sm:$0xf]
    %v226 = vld [vmem:[%s1 + $0x2fc] sm:$0xf]
    %v227 = vld [vmem:[%s1 + $0x300] sm:$0xf]
    %v228 = vld [vmem:[%s1 + $0x304] sm:$0xf]
    %v229 = vld [vmem:[%s1 + $0x308] sm:$0xf]
    %v230 = vld [vmem:[%s1 + $0x30c] sm:$0xf]
    %v231 = vld [vmem:[%s1 + $0x310] sm:$0xf]
    %v232 = vld [vmem:[%s1 + $0x314] sm:$0xf]
    %v233 = vld [vmem:[%s1 + $0x318] sm:$0xf]
    %v234 = vld [vmem:[%s1 + $0x31c] sm:$0xf]
    %v235 = vld [vmem:[%s1 + $0x320] sm:$0xf]
    %v236 = vld [vmem:[%s1 + $0x324] sm:$0xf]
    %v237 = vld [vmem:[%s1 + $0x328] sm:$0xf]
    %v238 = vld [vmem:[%s1 + $0x32c] sm:$0xf]
    %v239 = vld [vmem:[%s1 + $0x330] sm:$0xf]
    %v240 = vld [vmem:[%s1 + $0x334] sm:$0xf]
    %v241 = vld [vmem:[%s1 + $0x338] sm:$0xf]
    %v242 = vld [vmem:[%s1 + $0x33c] sm:$0xf]
    %v243 = vld [vmem:[%s1 + $0x340] sm:$0xf]
    %v244 = vld [vmem:[%s1 + $0x344] sm:$0xf]
    %v245 = vld [vmem:[%s1 + $0x348] sm:$0xf]
    %v246 = vld [vmem:[%s1 + $0x34c] sm:$0xf]
    %v247 = vld [vmem:[%s1 + $0x350] sm:$0xf]
    %v248 = vld [vmem:[%s1 + $0x354] sm:$0xf]
    %v249 = vld [vmem:[%s1 + $0x358] sm:$0xf]
    %v250 = vld [vmem:[%s1 + $0x35c] sm:$0xf]
    %v251 = vld [vmem:[%s1 + $0x360] sm:$0xf]
    %v252 = vld [vmem:[%s1 + $0x364] sm:$0xf]
    %v253 = vld [vmem:[%s1 + $0x368] sm:$0xf]
    %v254 = vld [vmem:[%s1 + $0x36c] sm:$0xf]
    %v255 = vld [vmem:[%s1 + $0x370] sm:$0xf]
    %v256 = vld [vmem:[%s1 + $0x374] sm:$0xf]
    %v257 = vld [vmem:[%s1 + $0x378] sm:$0xf]
    %v258 = vld [vmem:[%s1 + $0x37c] sm:$0xf]
    %v259 = vld [vmem:[%s1 + $0x380] sm:$0xf]
    %v260 = vld [vmem:[%s1 + $0x384] sm:$0xf]
    %v261 = vld [vmem:[%s1 + $0x388] sm:$0xf]
    %v262 = vld [vmem:[%s1 + $0x38c] sm:$0xf]
    %v263 = vld [vmem:[%s1 + $0x390] sm:$0xf]
    %v264 = vld [vmem:[%s1 + $0x394] sm:$0xf]
    %v265 = vld [vmem:[%s1 + $0x398] sm:$0xf]
    %v266 = vld [vmem:[%s1 + $0x39c] sm:$0xf]
    %v267 = vld [vmem:[%s1 + $0x3a0] sm:$0xf]
    %v268 = vld [vmem:[%s1 + $0x3a4] sm:$0xf]
    %v269 = vld [vmem:[%s1 + $0x3a8] sm:$0xf]
    %v270 = vld [vmem:[%s1 + $0x3ac] sm:$0xf]
    %v271 = vld [vmem:[%s1 + $0x3b0] sm:$0xf]
    %v272 = vld [vmem:[%s1 + $0x3b4] sm:$0xf]
    %v273 = vld [vmem:[%s1 + $0x3b8] sm:$0xf]
    %v274 = vld [vmem:[%s1 + $0x3bc] sm:$0xf]
    %v275 = vld [vmem:[%s1 + $0x3c0] sm:$0xf]
    %v276 = vld [vmem:[%s1 + $0x3c4] sm:$0xf]
    %v277 = vld [vmem:[%s1 + $0x3c8] sm:$0xf]
    %v278 = vld [vmem:[%s1 + $0x3cc] sm:$0xf]
    %v279 = vld [vmem:[%s1 + $0x3d0] sm:$0xf]
    %v280 = vld [vmem:[%s1 + $0x3d4] sm:$0xf]
    %v281 = vld [vmem:[%s1 + $0x3d8] sm:$0xf]
    %v282 = vld [vmem:[%s1 + $0x3dc] sm:$0xf]
    %v283 = vld [vmem:[%s1 + $0x3e0] sm:$0xf]
    %v284 = vld [vmem:[%s1 + $0x3e4] sm:$0xf]
    %v285 = vld [vmem:[%s1 + $0x3e8] sm:$0xf]
    %v286 = vld [vmem:[%s1 + $0x3ec] sm:$0xf]
    %v287 = vld [vmem:[%s1 + $0x3f0] sm:$0xf]
    %v288 = vld [vmem:[%s1 + $0x3f4] sm:$0xf]
    %v289 = vld [vmem:[%s1 + $0x3f8] sm:$0xf]
    %v290 = vld [vmem:[%s1 + $0x3fc] sm:$0xf]
    %v291 = vld [vmem:[%s2] sm:$0x1]
    %v293 = vlaneseq
    %v294 = vshrl.u32 %v293, 7
    %v295 = vsub.s32 0, %v294
    %v296 = vrot.slane %v291, %v295
    %v314 = vunpack.c.l.b16 %v19
    %v315 = vunpack.c.h.b16 %v19
    %v316 = vunpack.c.l.b16 %v20
    %v317 = vunpack.c.h.b16 %v20
    %v318 = vunpack.c.l.b16 %v21
    %v319 = vunpack.c.h.b16 %v21
    %v320 = vunpack.c.l.b16 %v22
    %v321 = vunpack.c.h.b16 %v22
    %v322 = vunpack.c.l.b16 %v23
    %v323 = vunpack.c.h.b16 %v23
    %v324 = vunpack.c.l.b16 %v24
    %v325 = vunpack.c.h.b16 %v24
    %v326 = vunpack.c.l.b16 %v25
    %v327 = vunpack.c.h.b16 %v25
    %v328 = vunpack.c.l.b16 %v26
    %v329 = vunpack.c.h.b16 %v26
    %v330 = vunpack.c.l.b16 %v27
    %v331 = vunpack.c.h.b16 %v27
    %v332 = vunpack.c.l.b16 %v28
    %v333 = vunpack.c.h.b16 %v28
    %v334 = vunpack.c.l.b16 %v29
    %v335 = vunpack.c.h.b16 %v29
    %v336 = vunpack.c.l.b16 %v30
    %v337 = vunpack.c.h.b16 %v30
    %v338 = vunpack.c.l.b16 %v31
    %v339 = vunpack.c.h.b16 %v31
    %v340 = vunpack.c.l.b16 %v32
    %v341 = vunpack.c.h.b16 %v32
    %v342 = vunpack.c.l.b16 %v33
    %v343 = vunpack.c.h.b16 %v33
    %v344 = vunpack.c.l.b16 %v34
    %v345 = vunpack.c.h.b16 %v34
    %v346 = vpack.c.b16 %v330, %v314
    %v347 = vpack.c.b16 %v331, %v315
    %v348 = vpack.c.b16 %v332, %v316
    %v349 = vpack.c.b16 %v333, %v317
    %v350 = vpack.c.b16 %v334, %v318
    %v351 = vpack.c.b16 %v335, %v319
    %v352 = vpack.c.b16 %v336, %v320
    %v353 = vpack.c.b16 %v337, %v321
    %v354 = vpack.c.b16 %v338, %v322
    %v355 = vpack.c.b16 %v339, %v323
    %v356 = vpack.c.b16 %v340, %v324
    %v357 = vpack.c.b16 %v341, %v325
    %v358 = vpack.c.b16 %v342, %v326
    %v359 = vpack.c.b16 %v343, %v327
    %v360 = vpack.c.b16 %v344, %v328
    %v361 = vpack.c.b16 %v345, %v329
    %v634 = vunpack.c.l.b16 %v35
    %v635 = vunpack.c.l.b16 %v36
    %v636 = vunpack.c.l.b16 %v37
    %v637 = vunpack.c.l.b16 %v38
    %v638 = vunpack.c.l.b16 %v39
    %v639 = vunpack.c.l.b16 %v40
    %v640 = vunpack.c.l.b16 %v41
    %v641 = vunpack.c.l.b16 %v42
    %v642 = vunpack.c.l.b16 %v43
    %v643 = vunpack.c.l.b16 %v44
    %v644 = vunpack.c.l.b16 %v45
    %v645 = vunpack.c.l.b16 %v46
    %v646 = vunpack.c.l.b16 %v47
    %v647 = vunpack.c.l.b16 %v48
    %v648 = vunpack.c.l.b16 %v49
    %v649 = vunpack.c.l.b16 %v50
    %v650 = vunpack.c.l.b16 %v51
    %v651 = vunpack.c.l.b16 %v52
    %v652 = vunpack.c.l.b16 %v53
    %v653 = vunpack.c.l.b16 %v54
    %v654 = vunpack.c.l.b16 %v55
    %v655 = vunpack.c.l.b16 %v56
    %v656 = vunpack.c.l.b16 %v57
    %v657 = vunpack.c.l.b16 %v58
    %v658 = vunpack.c.l.b16 %v59
    %v659 = vunpack.c.l.b16 %v60
    %v660 = vunpack.c.l.b16 %v61
    %v661 = vunpack.c.l.b16 %v62
    %v662 = vunpack.c.l.b16 %v63
    %v663 = vunpack.c.l.b16 %v64
    %v664 = vunpack.c.l.b16 %v65
    %v665 = vunpack.c.l.b16 %v66
    %v666 = vunpack.c.l.b16 %v67
    %v667 = vunpack.c.l.b16 %v68
    %v668 = vunpack.c.l.b16 %v69
    %v669 = vunpack.c.l.b16 %v70
    %v670 = vunpack.c.l.b16 %v71
    %v671 = vunpack.c.l.b16 %v72
    %v672 = vunpack.c.l.b16 %v73
    %v673 = vunpack.c.l.b16 %v74
    %v674 = vunpack.c.l.b16 %v75
    %v675 = vunpack.c.l.b16 %v76
    %v676 = vunpack.c.l.b16 %v77
    %v677 = vunpack.c.l.b16 %v78
    %v678 = vunpack.c.l.b16 %v79
    %v679 = vunpack.c.l.b16 %v80
    %v680 = vunpack.c.l.b16 %v81
    %v681 = vunpack.c.l.b16 %v82
    %v682 = vunpack.c.l.b16 %v83
    %v683 = vunpack.c.l.b16 %v84
    %v684 = vunpack.c.l.b16 %v85
    %v685 = vunpack.c.l.b16 %v86
    %v686 = vunpack.c.l.b16 %v87
    %v687 = vunpack.c.l.b16 %v88
    %v688 = vunpack.c.l.b16 %v89
    %v689 = vunpack.c.l.b16 %v90
    %v690 = vunpack.c.l.b16 %v91
    %v691 = vunpack.c.l.b16 %v92
    %v692 = vunpack.c.l.b16 %v93
    %v693 = vunpack.c.l.b16 %v94
    %v694 = vunpack.c.l.b16 %v95
    %v695 = vunpack.c.l.b16 %v96
    %v696 = vunpack.c.l.b16 %v97
    %v697 = vunpack.c.l.b16 %v98
    %v698 = vunpack.c.l.b16 %v99
    %v699 = vunpack.c.l.b16 %v100
    %v700 = vunpack.c.l.b16 %v101
    %v701 = vunpack.c.l.b16 %v102
    %v702 = vunpack.c.l.b16 %v103
    %v703 = vunpack.c.l.b16 %v104
    %v704 = vunpack.c.l.b16 %v105
    %v705 = vunpack.c.l.b16 %v106
    %v706 = vunpack.c.l.b16 %v107
    %v707 = vunpack.c.l.b16 %v108
    %v708 = vunpack.c.l.b16 %v109
    %v709 = vunpack.c.l.b16 %v110
    %v710 = vunpack.c.l.b16 %v111
    %v711 = vunpack.c.l.b16 %v112
    %v712 = vunpack.c.l.b16 %v113
    %v713 = vunpack.c.l.b16 %v114
    %v714 = vunpack.c.l.b16 %v115
    %v715 = vunpack.c.l.b16 %v116
    %v716 = vunpack.c.l.b16 %v117
    %v717 = vunpack.c.l.b16 %v118
    %v718 = vunpack.c.l.b16 %v119
    %v719 = vunpack.c.l.b16 %v120
    %v720 = vunpack.c.l.b16 %v121
    %v721 = vunpack.c.l.b16 %v122
    %v722 = vunpack.c.l.b16 %v123
    %v723 = vunpack.c.l.b16 %v124
    %v724 = vunpack.c.l.b16 %v125
    %v725 = vunpack.c.l.b16 %v126
    %v726 = vunpack.c.l.b16 %v127
    %v727 = vunpack.c.l.b16 %v128
    %v728 = vunpack.c.l.b16 %v129
    %v729 = vunpack.c.l.b16 %v130
    %v730 = vunpack.c.l.b16 %v131
    %v731 = vunpack.c.l.b16 %v132
    %v732 = vunpack.c.l.b16 %v133
    %v733 = vunpack.c.l.b16 %v134
    %v734 = vunpack.c.l.b16 %v135
    %v735 = vunpack.c.l.b16 %v136
    %v736 = vunpack.c.l.b16 %v137
    %v737 = vunpack.c.l.b16 %v138
    %v738 = vunpack.c.l.b16 %v139
    %v739 = vunpack.c.l.b16 %v140
    %v740 = vunpack.c.l.b16 %v141
    %v741 = vunpack.c.l.b16 %v142
    %v742 = vunpack.c.l.b16 %v143
    %v743 = vunpack.c.l.b16 %v144
    %v744 = vunpack.c.l.b16 %v145
    %v745 = vunpack.c.l.b16 %v146
    %v746 = vunpack.c.l.b16 %v147
    %v747 = vunpack.c.l.b16 %v148
    %v748 = vunpack.c.l.b16 %v149
    %v749 = vunpack.c.l.b16 %v150
    %v750 = vunpack.c.l.b16 %v151
    %v751 = vunpack.c.l.b16 %v152
    %v752 = vunpack.c.l.b16 %v153
    %v753 = vunpack.c.l.b16 %v154
    %v754 = vunpack.c.l.b16 %v155
    %v755 = vunpack.c.l.b16 %v156
    %v756 = vunpack.c.l.b16 %v157
    %v757 = vunpack.c.l.b16 %v158
    %v758 = vunpack.c.l.b16 %v159
    %v759 = vunpack.c.l.b16 %v160
    %v760 = vunpack.c.l.b16 %v161
    %v761 = vunpack.c.l.b16 %v162
    %v762 = vunpack.c.l.b16 %v163
    %v763 = vunpack.c.l.b16 %v164
    %v764 = vunpack.c.l.b16 %v165
    %v765 = vunpack.c.l.b16 %v166
    %v766 = vunpack.c.l.b16 %v167
    %v767 = vunpack.c.l.b16 %v168
    %v768 = vunpack.c.l.b16 %v169
    %v769 = vunpack.c.l.b16 %v170
    %v770 = vunpack.c.l.b16 %v171
    %v771 = vunpack.c.l.b16 %v172
    %v772 = vunpack.c.l.b16 %v173
    %v773 = vunpack.c.l.b16 %v174
    %v774 = vunpack.c.l.b16 %v175
    %v775 = vunpack.c.l.b16 %v176
    %v776 = vunpack.c.l.b16 %v177
    %v777 = vunpack.c.l.b16 %v178
    %v778 = vunpack.c.l.b16 %v179
    %v779 = vunpack.c.l.b16 %v180
    %v780 = vunpack.c.l.b16 %v181
    %v781 = vunpack.c.l.b16 %v182
    %v782 = vunpack.c.l.b16 %v183
    %v783 = vunpack.c.l.b16 %v184
    %v784 = vunpack.c.l.b16 %v185
    %v785 = vunpack.c.l.b16 %v186
    %v786 = vunpack.c.l.b16 %v187
    %v787 = vunpack.c.l.b16 %v188
    %v788 = vunpack.c.l.b16 %v189
    %v789 = vunpack.c.l.b16 %v190
    %v790 = vunpack.c.l.b16 %v191
    %v791 = vunpack.c.l.b16 %v192
    %v792 = vunpack.c.l.b16 %v193
    %v793 = vunpack.c.l.b16 %v194
    %v794 = vunpack.c.l.b16 %v195
    %v795 = vunpack.c.l.b16 %v196
    %v796 = vunpack.c.l.b16 %v197
    %v797 = vunpack.c.l.b16 %v198
    %v798 = vunpack.c.l.b16 %v199
    %v799 = vunpack.c.l.b16 %v200
    %v800 = vunpack.c.l.b16 %v201
    %v801 = vunpack.c.l.b16 %v202
    %v802 = vunpack.c.l.b16 %v203
    %v803 = vunpack.c.l.b16 %v204
    %v804 = vunpack.c.l.b16 %v205
    %v805 = vunpack.c.l.b16 %v206
    %v806 = vunpack.c.l.b16 %v207
    %v807 = vunpack.c.l.b16 %v208
    %v808 = vunpack.c.l.b16 %v209
    %v809 = vunpack.c.l.b16 %v210
    %v810 = vunpack.c.l.b16 %v211
    %v811 = vunpack.c.l.b16 %v212
    %v812 = vunpack.c.l.b16 %v213
    %v813 = vunpack.c.l.b16 %v214
    %v814 = vunpack.c.l.b16 %v215
    %v815 = vunpack.c.l.b16 %v216
    %v816 = vunpack.c.l.b16 %v217
    %v817 = vunpack.c.l.b16 %v218
    %v818 = vunpack.c.l.b16 %v219
    %v819 = vunpack.c.l.b16 %v220
    %v820 = vunpack.c.l.b16 %v221
    %v821 = vunpack.c.l.b16 %v222
    %v822 = vunpack.c.l.b16 %v223
    %v823 = vunpack.c.l.b16 %v224
    %v824 = vunpack.c.l.b16 %v225
    %v825 = vunpack.c.l.b16 %v226
    %v826 = vunpack.c.l.b16 %v227
    %v827 = vunpack.c.l.b16 %v228
    %v828 = vunpack.c.l.b16 %v229
    %v829 = vunpack.c.l.b16 %v230
    %v830 = vunpack.c.l.b16 %v231
    %v831 = vunpack.c.l.b16 %v232
    %v832 = vunpack.c.l.b16 %v233
    %v833 = vunpack.c.l.b16 %v234
    %v834 = vunpack.c.l.b16 %v235
    %v835 = vunpack.c.l.b16 %v236
    %v836 = vunpack.c.l.b16 %v237
    %v837 = vunpack.c.l.b16 %v238
    %v838 = vunpack.c.l.b16 %v239
    %v839 = vunpack.c.l.b16 %v240
    %v840 = vunpack.c.l.b16 %v241
    %v841 = vunpack.c.l.b16 %v242
    %v842 = vunpack.c.l.b16 %v243
    %v843 = vunpack.c.l.b16 %v244
    %v844 = vunpack.c.l.b16 %v245
    %v845 = vunpack.c.l.b16 %v246
    %v846 = vunpack.c.l.b16 %v247
    %v847 = vunpack.c.l.b16 %v248
    %v848 = vunpack.c.l.b16 %v249
    %v849 = vunpack.c.l.b16 %v250
    %v850 = vunpack.c.l.b16 %v251
    %v851 = vunpack.c.l.b16 %v252
    %v852 = vunpack.c.l.b16 %v253
    %v853 = vunpack.c.l.b16 %v254
    %v854 = vunpack.c.l.b16 %v255
    %v855 = vunpack.c.l.b16 %v256
    %v856 = vunpack.c.l.b16 %v257
    %v857 = vunpack.c.l.b16 %v258
    %v858 = vunpack.c.l.b16 %v259
    %v859 = vunpack.c.l.b16 %v260
    %v860 = vunpack.c.l.b16 %v261
    %v861 = vunpack.c.l.b16 %v262
    %v862 = vunpack.c.l.b16 %v263
    %v863 = vunpack.c.l.b16 %v264
    %v864 = vunpack.c.l.b16 %v265
    %v865 = vunpack.c.l.b16 %v266
    %v866 = vunpack.c.l.b16 %v267
    %v867 = vunpack.c.l.b16 %v268
    %v868 = vunpack.c.l.b16 %v269
    %v869 = vunpack.c.l.b16 %v270
    %v870 = vunpack.c.l.b16 %v271
    %v871 = vunpack.c.l.b16 %v272
    %v872 = vunpack.c.l.b16 %v273
    %v873 = vunpack.c.l.b16 %v274
    %v874 = vunpack.c.l.b16 %v275
    %v875 = vunpack.c.l.b16 %v276
    %v876 = vunpack.c.l.b16 %v277
    %v877 = vunpack.c.l.b16 %v278
    %v878 = vunpack.c.l.b16 %v279
    %v879 = vunpack.c.l.b16 %v280
    %v880 = vunpack.c.l.b16 %v281
    %v881 = vunpack.c.l.b16 %v282
    %v882 = vunpack.c.l.b16 %v283
    %v883 = vunpack.c.l.b16 %v284
    %v884 = vunpack.c.l.b16 %v285
    %v885 = vunpack.c.l.b16 %v286
    %v886 = vunpack.c.l.b16 %v287
    %v887 = vunpack.c.l.b16 %v288
    %v888 = vunpack.c.l.b16 %v289
    %v889 = vunpack.c.l.b16 %v290
    %v890 = vpack.c.b16 %v635, %v634
    %v891 = vpack.c.b16 %v637, %v636
    %v892 = vpack.c.b16 %v639, %v638
    %v893 = vpack.c.b16 %v641, %v640
    %v894 = vpack.c.b16 %v643, %v642
    %v895 = vpack.c.b16 %v645, %v644
    %v896 = vpack.c.b16 %v647, %v646
    %v897 = vpack.c.b16 %v649, %v648
    %v898 = vpack.c.b16 %v651, %v650
    %v899 = vpack.c.b16 %v653, %v652
    %v900 = vpack.c.b16 %v655, %v654
    %v901 = vpack.c.b16 %v657, %v656
    %v902 = vpack.c.b16 %v659, %v658
    %v903 = vpack.c.b16 %v661, %v660
    %v904 = vpack.c.b16 %v663, %v662
    %v905 = vpack.c.b16 %v665, %v664
    %v906 = vpack.c.b16 %v667, %v666
    %v907 = vpack.c.b16 %v669, %v668
    %v908 = vpack.c.b16 %v671, %v670
    %v909 = vpack.c.b16 %v673, %v672
    %v910 = vpack.c.b16 %v675, %v674
    %v911 = vpack.c.b16 %v677, %v676
    %v912 = vpack.c.b16 %v679, %v678
    %v913 = vpack.c.b16 %v681, %v680
    %v914 = vpack.c.b16 %v683, %v682
    %v915 = vpack.c.b16 %v685, %v684
    %v916 = vpack.c.b16 %v687, %v686
    %v917 = vpack.c.b16 %v689, %v688
    %v918 = vpack.c.b16 %v691, %v690
    %v919 = vpack.c.b16 %v693, %v692
    %v920 = vpack.c.b16 %v695, %v694
    %v921 = vpack.c.b16 %v697, %v696
    %v922 = vpack.c.b16 %v699, %v698
    %v923 = vpack.c.b16 %v701, %v700
    %v924 = vpack.c.b16 %v703, %v702
    %v925 = vpack.c.b16 %v705, %v704
    %v926 = vpack.c.b16 %v707, %v706
    %v927 = vpack.c.b16 %v709, %v708
    %v928 = vpack.c.b16 %v711, %v710
    %v929 = vpack.c.b16 %v713, %v712
    %v930 = vpack.c.b16 %v715, %v714
    %v931 = vpack.c.b16 %v717, %v716
    %v932 = vpack.c.b16 %v719, %v718
    %v933 = vpack.c.b16 %v721, %v720
    %v934 = vpack.c.b16 %v723, %v722
    %v935 = vpack.c.b16 %v725, %v724
    %v936 = vpack.c.b16 %v727, %v726
    %v937 = vpack.c.b16 %v729, %v728
    %v938 = vpack.c.b16 %v731, %v730
    %v939 = vpack.c.b16 %v733, %v732
    %v940 = vpack.c.b16 %v735, %v734
    %v941 = vpack.c.b16 %v737, %v736
    %v942 = vpack.c.b16 %v739, %v738
    %v943 = vpack.c.b16 %v741, %v740
    %v944 = vpack.c.b16 %v743, %v742
    %v945 = vpack.c.b16 %v745, %v744
    %v946 = vpack.c.b16 %v747, %v746
    %v947 = vpack.c.b16 %v749, %v748
    %v948 = vpack.c.b16 %v751, %v750
    %v949 = vpack.c.b16 %v753, %v752
    %v950 = vpack.c.b16 %v755, %v754
    %v951 = vpack.c.b16 %v757, %v756
    %v952 = vpack.c.b16 %v759, %v758
    %v953 = vpack.c.b16 %v761, %v760
    %v954 = vpack.c.b16 %v763, %v762
    %v955 = vpack.c.b16 %v765, %v764
    %v956 = vpack.c.b16 %v767, %v766
    %v957 = vpack.c.b16 %v769, %v768
    %v958 = vpack.c.b16 %v771, %v770
    %v959 = vpack.c.b16 %v773, %v772
    %v960 = vpack.c.b16 %v775, %v774
    %v961 = vpack.c.b16 %v777, %v776
    %v962 = vpack.c.b16 %v779, %v778
    %v963 = vpack.c.b16 %v781, %v780
    %v964 = vpack.c.b16 %v783, %v782
    %v965 = vpack.c.b16 %v785, %v784
    %v966 = vpack.c.b16 %v787, %v786
    %v967 = vpack.c.b16 %v789, %v788
    %v968 = vpack.c.b16 %v791, %v790
    %v969 = vpack.c.b16 %v793, %v792
    %v970 = vpack.c.b16 %v795, %v794
    %v971 = vpack.c.b16 %v797, %v796
    %v972 = vpack.c.b16 %v799, %v798
    %v973 = vpack.c.b16 %v801, %v800
    %v974 = vpack.c.b16 %v803, %v802
    %v975 = vpack.c.b16 %v805, %v804
    %v976 = vpack.c.b16 %v807, %v806
    %v977 = vpack.c.b16 %v809, %v808
    %v978 = vpack.c.b16 %v811, %v810
    %v979 = vpack.c.b16 %v813, %v812
    %v980 = vpack.c.b16 %v815, %v814
    %v981 = vpack.c.b16 %v817, %v816
    %v982 = vpack.c.b16 %v819, %v818
    %v983 = vpack.c.b16 %v821, %v820
    %v984 = vpack.c.b16 %v823, %v822
    %v985 = vpack.c.b16 %v825, %v824
    %v986 = vpack.c.b16 %v827, %v826
    %v987 = vpack.c.b16 %v829, %v828
    %v988 = vpack.c.b16 %v831, %v830
    %v989 = vpack.c.b16 %v833, %v832
    %v990 = vpack.c.b16 %v835, %v834
    %v991 = vpack.c.b16 %v837, %v836
    %v992 = vpack.c.b16 %v839, %v838
    %v993 = vpack.c.b16 %v841, %v840
    %v994 = vpack.c.b16 %v843, %v842
    %v995 = vpack.c.b16 %v845, %v844
    %v996 = vpack.c.b16 %v847, %v846
    %v997 = vpack.c.b16 %v849, %v848
    %v998 = vpack.c.b16 %v851, %v850
    %v999 = vpack.c.b16 %v853, %v852
    %v1000 = vpack.c.b16 %v855, %v854
    %v1001 = vpack.c.b16 %v857, %v856
    %v1002 = vpack.c.b16 %v859, %v858
    %v1003 = vpack.c.b16 %v861, %v860
    %v1004 = vpack.c.b16 %v863, %v862
    %v1005 = vpack.c.b16 %v865, %v864
    %v1006 = vpack.c.b16 %v867, %v866
    %v1007 = vpack.c.b16 %v869, %v868
    %v1008 = vpack.c.b16 %v871, %v870
    %v1009 = vpack.c.b16 %v873, %v872
    %v1010 = vpack.c.b16 %v875, %v874
    %v1011 = vpack.c.b16 %v877, %v876
    %v1012 = vpack.c.b16 %v879, %v878
    %v1013 = vpack.c.b16 %v881, %v880
    %v1014 = vpack.c.b16 %v883, %v882
    %v1015 = vpack.c.b16 %v885, %v884
    %v1016 = vpack.c.b16 %v887, %v886
    %v1017 = vpack.c.b16 %v889, %v888
    %1146 = vmatprep.subr.bf16.mxu0 0
    %1147 = vmatpush1.bf16.msra.mxu0 %v890
    %1148 = vmatprep.subr.bf16.mxu0 0
    %1149 = vmatpush1.bf16.msra.mxu0 %v891
    %1150 = vmatprep.subr.bf16.mxu0 0
    %1151 = vmatpush1.bf16.msra.mxu0 %v892
    %1152 = vmatprep.subr.bf16.mxu0 0
    %1153 = vmatpush1.bf16.msra.mxu0 %v893
    %1154 = vmatprep.subr.bf16.mxu0 0
    %1155 = vmatpush1.bf16.msra.mxu0 %v894
    %1156 = vmatprep.subr.bf16.mxu0 0
    %1157 = vmatpush1.bf16.msra.mxu0 %v895
    %1158 = vmatprep.subr.bf16.mxu0 0
    %1159 = vmatpush1.bf16.msra.mxu0 %v896
    %1160 = vmatprep.subr.bf16.mxu0 0
    %1161 = vmatpush1.bf16.msra.mxu0 %v897
    %1162 = vmatprep.subr.bf16.mxu0 0
    %1163 = vmatpush1.bf16.msra.mxu0 %v898
    %1164 = vmatprep.subr.bf16.mxu0 0
    %1165 = vmatpush1.bf16.msra.mxu0 %v899
    %1166 = vmatprep.subr.bf16.mxu0 0
    %1167 = vmatpush1.bf16.msra.mxu0 %v900
    %1168 = vmatprep.subr.bf16.mxu0 0
    %1169 = vmatpush1.bf16.msra.mxu0 %v901
    %1170 = vmatprep.subr.bf16.mxu0 0
    %1171 = vmatpush1.bf16.msra.mxu0 %v902
    %1172 = vmatprep.subr.bf16.mxu0 0
    %1173 = vmatpush1.bf16.msra.mxu0 %v903
    %1174 = vmatprep.subr.bf16.mxu0 0
    %1175 = vmatpush1.bf16.msra.mxu0 %v904
    %1176 = vmatprep.subr.bf16.mxu0 0
    %1177 = vmatpush1.bf16.msra.mxu0 %v905
    %1178 = vmatprep.mubr.bf16.mxu0 %v347
    %1179 = vmatmul.mubr.bf16.gmra.mrb[0].mxu0 %v346
    %v1180 = vpop.f32.mrb[0].mxu0
    %v1181 = vadd.f32 %v296, %v1180
    %v1182 = vpop.f32.mrb[0].mxu0
    %v1183 = vpop.f32.mrb[0].mxu0
    %v1184 = vadd.f32 %v296, %v1183
    %v1185 = vpop.f32.mrb[0].mxu0
    %1186 = vdwg.mxu0
    %1187 = vmatprep.subr.bf16.mxu0 0
    %1188 = vmatpush1.bf16.msra.mxu0 %v906
    %1189 = vmatprep.subr.bf16.mxu0 0
    %1190 = vmatpush1.bf16.msra.mxu0 %v907
    %1191 = vmatprep.subr.bf16.mxu0 0
    %1192 = vmatpush1.bf16.msra.mxu0 %v908
    %1193 = vmatprep.subr.bf16.mxu0 0
    %1194 = vmatpush1.bf16.msra.mxu0 %v909
    %1195 = vmatprep.subr.bf16.mxu0 0
    %1196 = vmatpush1.bf16.msra.mxu0 %v910
    %1197 = vmatprep.subr.bf16.mxu0 0
    %1198 = vmatpush1.bf16.msra.mxu0 %v911
    %1199 = vmatprep.subr.bf16.mxu0 0
    %1200 = vmatpush1.bf16.msra.mxu0 %v912
    %1201 = vmatprep.subr.bf16.mxu0 0
    %1202 = vmatpush1.bf16.msra.mxu0 %v913
    %1203 = vmatprep.subr.bf16.mxu0 0
    %1204 = vmatpush1.bf16.msra.mxu0 %v914
    %1205 = vmatprep.subr.bf16.mxu0 0
    %1206 = vmatpush1.bf16.msra.mxu0 %v915
    %1207 = vmatprep.subr.bf16.mxu0 0
    %1208 = vmatpush1.bf16.msra.mxu0 %v916
    %1209 = vmatprep.subr.bf16.mxu0 0
    %1210 = vmatpush1.bf16.msra.mxu0 %v917
    %1211 = vmatprep.subr.bf16.mxu0 0
    %1212 = vmatpush1.bf16.msra.mxu0 %v918
    %1213 = vmatprep.subr.bf16.mxu0 0
    %1214 = vmatpush1.bf16.msra.mxu0 %v919
    %1215 = vmatprep.subr.bf16.mxu0 0
    %1216 = vmatpush1.bf16.msra.mxu0 %v920
    %1217 = vmatprep.subr.bf16.mxu0 0
    %1218 = vmatpush1.bf16.msra.mxu0 %v921
    %1219 = vmatprep.mubr.bf16.mxu0 %v349
    %1220 = vmatmul.mubr.bf16.gmra.mrb[0].mxu0 %v348
    %v1221 = vpop.f32.mrb[0].mxu0
    %v1222 = vadd.f32 %v1181, %v1221
    %v1223 = vpop.f32.mrb[0].mxu0
    %v1224 = vpop.f32.mrb[0].mxu0
    %v1225 = vadd.f32 %v1184, %v1224
    %v1226 = vpop.f32.mrb[0].mxu0
    %1227 = vdwg.mxu0
    %1228 = vmatprep.subr.bf16.mxu0 0
    %1229 = vmatpush1.bf16.msra.mxu0 %v922
    %1230 = vmatprep.subr.bf16.mxu0 0
    %1231 = vmatpush1.bf16.msra.mxu0 %v923
    %1232 = vmatprep.subr.bf16.mxu0 0
    %1233 = vmatpush1.bf16.msra.mxu0 %v924
    %1234 = vmatprep.subr.bf16.mxu0 0
    %1235 = vmatpush1.bf16.msra.mxu0 %v925
    %1236 = vmatprep.subr.bf16.mxu0 0
    %1237 = vmatpush1.bf16.msra.mxu0 %v926
    %1238 = vmatprep.subr.bf16.mxu0 0
    %1239 = vmatpush1.bf16.msra.mxu0 %v927
    %1240 = vmatprep.subr.bf16.mxu0 0
    %1241 = vmatpush1.bf16.msra.mxu0 %v928
    %1242 = vmatprep.subr.bf16.mxu0 0
    %1243 = vmatpush1.bf16.msra.mxu0 %v929
    %1244 = vmatprep.subr.bf16.mxu0 0
    %1245 = vmatpush1.bf16.msra.mxu0 %v930
    %1246 = vmatprep.subr.bf16.mxu0 0
    %1247 = vmatpush1.bf16.msra.mxu0 %v931
    %1248 = vmatprep.subr.bf16.mxu0 0
    %1249 = vmatpush1.bf16.msra.mxu0 %v932
    %1250 = vmatprep.subr.bf16.mxu0 0
    %1251 = vmatpush1.bf16.msra.mxu0 %v933
    %1252 = vmatprep.subr.bf16.mxu0 0
    %1253 = vmatpush1.bf16.msra.mxu0 %v934
    %1254 = vmatprep.subr.bf16.mxu0 0
    %1255 = vmatpush1.bf16.msra.mxu0 %v935
    %1256 = vmatprep.subr.bf16.mxu0 0
    %1257 = vmatpush1.bf16.msra.mxu0 %v936
    %1258 = vmatprep.subr.bf16.mxu0 0
    %1259 = vmatpush1.bf16.msra.mxu0 %v937
    %1260 = vmatprep.mubr.bf16.mxu0 %v351
    %1261 = vmatmul.mubr.bf16.gmra.mrb[0].mxu0 %v350
    %v1262 = vpop.f32.mrb[0].mxu0
    %v1263 = vadd.f32 %v1222, %v1262
    %v1264 = vpop.f32.mrb[0].mxu0
    %v1265 = vpop.f32.mrb[0].mxu0
    %v1266 = vadd.f32 %v1225, %v1265
    %v1267 = vpop.f32.mrb[0].mxu0
    %1268 = vdwg.mxu0
    %1269 = vmatprep.subr.bf16.mxu0 0
    %1270 = vmatpush1.bf16.msra.mxu0 %v938
    %1271 = vmatprep.subr.bf16.mxu0 0
    %1272 = vmatpush1.bf16.msra.mxu0 %v939
    %1273 = vmatprep.subr.bf16.mxu0 0
    %1274 = vmatpush1.bf16.msra.mxu0 %v940
    %1275 = vmatprep.subr.bf16.mxu0 0
    %1276 = vmatpush1.bf16.msra.mxu0 %v941
    %1277 = vmatprep.subr.bf16.mxu0 0
    %1278 = vmatpush1.bf16.msra.mxu0 %v942
    %1279 = vmatprep.subr.bf16.mxu0 0
    %1280 = vmatpush1.bf16.msra.mxu0 %v943
    %1281 = vmatprep.subr.bf16.mxu0 0
    %1282 = vmatpush1.bf16.msra.mxu0 %v944
    %1283 = vmatprep.subr.bf16.mxu0 0
    %1284 = vmatpush1.bf16.msra.mxu0 %v945
    %1285 = vmatprep.subr.bf16.mxu0 0
    %1286 = vmatpush1.bf16.msra.mxu0 %v946
    %1287 = vmatprep.subr.bf16.mxu0 0
    %1288 = vmatpush1.bf16.msra.mxu0 %v947
    %1289 = vmatprep.subr.bf16.mxu0 0
    %1290 = vmatpush1.bf16.msra.mxu0 %v948
    %1291 = vmatprep.subr.bf16.mxu0 0
    %1292 = vmatpush1.bf16.msra.mxu0 %v949
    %1293 = vmatprep.subr.bf16.mxu0 0
    %1294 = vmatpush1.bf16.msra.mxu0 %v950
    %1295 = vmatprep.subr.bf16.mxu0 0
    %1296 = vmatpush1.bf16.msra.mxu0 %v951
    %1297 = vmatprep.subr.bf16.mxu0 0
    %1298 = vmatpush1.bf16.msra.mxu0 %v952
    %1299 = vmatprep.subr.bf16.mxu0 0
    %1300 = vmatpush1.bf16.msra.mxu0 %v953
    %1301 = vmatprep.mubr.bf16.mxu0 %v353
    %1302 = vmatmul.mubr.bf16.gmra.mrb[0].mxu0 %v352
    %v1303 = vpop.f32.mrb[0].mxu0
    %v1304 = vadd.f32 %v1263, %v1303
    %v1305 = vpop.f32.mrb[0].mxu0
    %v1306 = vpop.f32.mrb[0].mxu0
    %v1307 = vadd.f32 %v1266, %v1306
    %v1308 = vpop.f32.mrb[0].mxu0
    %1309 = vdwg.mxu0
    %1310 = vmatprep.subr.bf16.mxu0 0
    %1311 = vmatpush1.bf16.msra.mxu0 %v954
    %1312 = vmatprep.subr.bf16.mxu0 0
    %1313 = vmatpush1.bf16.msra.mxu0 %v955
    %1314 = vmatprep.subr.bf16.mxu0 0
    %1315 = vmatpush1.bf16.msra.mxu0 %v956
    %1316 = vmatprep.subr.bf16.mxu0 0
    %1317 = vmatpush1.bf16.msra.mxu0 %v957
    %1318 = vmatprep.subr.bf16.mxu0 0
    %1319 = vmatpush1.bf16.msra.mxu0 %v958
    %1320 = vmatprep.subr.bf16.mxu0 0
    %1321 = vmatpush1.bf16.msra.mxu0 %v959
    %1322 = vmatprep.subr.bf16.mxu0 0
    %1323 = vmatpush1.bf16.msra.mxu0 %v960
    %1324 = vmatprep.subr.bf16.mxu0 0
    %1325 = vmatpush1.bf16.msra.mxu0 %v961
    %1326 = vmatprep.subr.bf16.mxu0 0
    %1327 = vmatpush1.bf16.msra.mxu0 %v962
    %1328 = vmatprep.subr.bf16.mxu0 0
    %1329 = vmatpush1.bf16.msra.mxu0 %v963
    %1330 = vmatprep.subr.bf16.mxu0 0
    %1331 = vmatpush1.bf16.msra.mxu0 %v964
    %1332 = vmatprep.subr.bf16.mxu0 0
    %1333 = vmatpush1.bf16.msra.mxu0 %v965
    %1334 = vmatprep.subr.bf16.mxu0 0
    %1335 = vmatpush1.bf16.msra.mxu0 %v966
    %1336 = vmatprep.subr.bf16.mxu0 0
    %1337 = vmatpush1.bf16.msra.mxu0 %v967
    %1338 = vmatprep.subr.bf16.mxu0 0
    %1339 = vmatpush1.bf16.msra.mxu0 %v968
    %1340 = vmatprep.subr.bf16.mxu0 0
    %1341 = vmatpush1.bf16.msra.mxu0 %v969
    %1342 = vmatprep.mubr.bf16.mxu0 %v355
    %1343 = vmatmul.mubr.bf16.gmra.mrb[0].mxu0 %v354
    %v1344 = vpop.f32.mrb[0].mxu0
    %v1345 = vadd.f32 %v1304, %v1344
    %v1346 = vpop.f32.mrb[0].mxu0
    %v1347 = vpop.f32.mrb[0].mxu0
    %v1348 = vadd.f32 %v1307, %v1347
    %v1349 = vpop.f32.mrb[0].mxu0
    %1350 = vdwg.mxu0
    %1351 = vmatprep.subr.bf16.mxu0 0
    %1352 = vmatpush1.bf16.msra.mxu0 %v970
    %1353 = vmatprep.subr.bf16.mxu0 0
    %1354 = vmatpush1.bf16.msra.mxu0 %v971
    %1355 = vmatprep.subr.bf16.mxu0 0
    %1356 = vmatpush1.bf16.msra.mxu0 %v972
    %1357 = vmatprep.subr.bf16.mxu0 0
    %1358 = vmatpush1.bf16.msra.mxu0 %v973
    %1359 = vmatprep.subr.bf16.mxu0 0
    %1360 = vmatpush1.bf16.msra.mxu0 %v974
    %1361 = vmatprep.subr.bf16.mxu0 0
    %1362 = vmatpush1.bf16.msra.mxu0 %v975
    %1363 = vmatprep.subr.bf16.mxu0 0
    %1364 = vmatpush1.bf16.msra.mxu0 %v976
    %1365 = vmatprep.subr.bf16.mxu0 0
    %1366 = vmatpush1.bf16.msra.mxu0 %v977
    %1367 = vmatprep.subr.bf16.mxu0 0
    %1368 = vmatpush1.bf16.msra.mxu0 %v978
    %1369 = vmatprep.subr.bf16.mxu0 0
    %1370 = vmatpush1.bf16.msra.mxu0 %v979
    %1371 = vmatprep.subr.bf16.mxu0 0
    %1372 = vmatpush1.bf16.msra.mxu0 %v980
    %1373 = vmatprep.subr.bf16.mxu0 0
    %1374 = vmatpush1.bf16.msra.mxu0 %v981
    %1375 = vmatprep.subr.bf16.mxu0 0
    %1376 = vmatpush1.bf16.msra.mxu0 %v982
    %1377 = vmatprep.subr.bf16.mxu0 0
    %1378 = vmatpush1.bf16.msra.mxu0 %v983
    %1379 = vmatprep.subr.bf16.mxu0 0
    %1380 = vmatpush1.bf16.msra.mxu0 %v984
    %1381 = vmatprep.subr.bf16.mxu0 0
    %1382 = vmatpush1.bf16.msra.mxu0 %v985
    %1383 = vmatprep.mubr.bf16.mxu0 %v357
    %1384 = vmatmul.mubr.bf16.gmra.mrb[0].mxu0 %v356
    %v1385 = vpop.f32.mrb[0].mxu0
    %v1386 = vadd.f32 %v1345, %v1385
    %v1387 = vpop.f32.mrb[0].mxu0
    %v1388 = vpop.f32.mrb[0].mxu0
    %v1389 = vadd.f32 %v1348, %v1388
    %v1390 = vpop.f32.mrb[0].mxu0
    %1391 = vdwg.mxu0
    %1392 = vmatprep.subr.bf16.mxu0 0
    %1393 = vmatpush1.bf16.msra.mxu0 %v986
    %1394 = vmatprep.subr.bf16.mxu0 0
    %1395 = vmatpush1.bf16.msra.mxu0 %v987
    %1396 = vmatprep.subr.bf16.mxu0 0
    %1397 = vmatpush1.bf16.msra.mxu0 %v988
    %1398 = vmatprep.subr.bf16.mxu0 0
    %1399 = vmatpush1.bf16.msra.mxu0 %v989
    %1400 = vmatprep.subr.bf16.mxu0 0
    %1401 = vmatpush1.bf16.msra.mxu0 %v990
    %1402 = vmatprep.subr.bf16.mxu0 0
    %1403 = vmatpush1.bf16.msra.mxu0 %v991
    %1404 = vmatprep.subr.bf16.mxu0 0
    %1405 = vmatpush1.bf16.msra.mxu0 %v992
    %1406 = vmatprep.subr.bf16.mxu0 0
    %1407 = vmatpush1.bf16.msra.mxu0 %v993
    %1408 = vmatprep.subr.bf16.mxu0 0
    %1409 = vmatpush1.bf16.msra.mxu0 %v994
    %1410 = vmatprep.subr.bf16.mxu0 0
    %1411 = vmatpush1.bf16.msra.mxu0 %v995
    %1412 = vmatprep.subr.bf16.mxu0 0
    %1413 = vmatpush1.bf16.msra.mxu0 %v996
    %1414 = vmatprep.subr.bf16.mxu0 0
    %1415 = vmatpush1.bf16.msra.mxu0 %v997
    %1416 = vmatprep.subr.bf16.mxu0 0
    %1417 = vmatpush1.bf16.msra.mxu0 %v998
    %1418 = vmatprep.subr.bf16.mxu0 0
    %1419 = vmatpush1.bf16.msra.mxu0 %v999
    %1420 = vmatprep.subr.bf16.mxu0 0
    %1421 = vmatpush1.bf16.msra.mxu0 %v1000
    %1422 = vmatprep.subr.bf16.mxu0 0
    %1423 = vmatpush1.bf16.msra.mxu0 %v1001
    %1424 = vmatprep.mubr.bf16.mxu0 %v359
    %1425 = vmatmul.mubr.bf16.gmra.mrb[0].mxu0 %v358
    %v1426 = vpop.f32.mrb[0].mxu0
    %v1427 = vadd.f32 %v1386, %v1426
    %v1428 = vpop.f32.mrb[0].mxu0
    %v1429 = vpop.f32.mrb[0].mxu0
    %v1430 = vadd.f32 %v1389, %v1429
    %v1431 = vpop.f32.mrb[0].mxu0
    %1432 = vdwg.mxu0
    %1433 = vmatprep.subr.bf16.mxu0 0
    %1434 = vmatpush1.bf16.msra.mxu0 %v1002
    %1435 = vmatprep.subr.bf16.mxu0 0
    %1436 = vmatpush1.bf16.msra.mxu0 %v1003
    %1437 = vmatprep.subr.bf16.mxu0 0
    %1438 = vmatpush1.bf16.msra.mxu0 %v1004
    %1439 = vmatprep.subr.bf16.mxu0 0
    %1440 = vmatpush1.bf16.msra.mxu0 %v1005
    %1441 = vmatprep.subr.bf16.mxu0 0
    %1442 = vmatpush1.bf16.msra.mxu0 %v1006
    %1443 = vmatprep.subr.bf16.mxu0 0
    %1444 = vmatpush1.bf16.msra.mxu0 %v1007
    %1445 = vmatprep.subr.bf16.mxu0 0
    %1446 = vmatpush1.bf16.msra.mxu0 %v1008
    %1447 = vmatprep.subr.bf16.mxu0 0
    %1448 = vmatpush1.bf16.msra.mxu0 %v1009
    %1449 = vmatprep.subr.bf16.mxu0 0
    %1450 = vmatpush1.bf16.msra.mxu0 %v1010
    %1451 = vmatprep.subr.bf16.mxu0 0
    %1452 = vmatpush1.bf16.msra.mxu0 %v1011
    %1453 = vmatprep.subr.bf16.mxu0 0
    %1454 = vmatpush1.bf16.msra.mxu0 %v1012
    %1455 = vmatprep.subr.bf16.mxu0 0
    %1456 = vmatpush1.bf16.msra.mxu0 %v1013
    %1457 = vmatprep.subr.bf16.mxu0 0
    %1458 = vmatpush1.bf16.msra.mxu0 %v1014
    %1459 = vmatprep.subr.bf16.mxu0 0
    %1460 = vmatpush1.bf16.msra.mxu0 %v1015
    %1461 = vmatprep.subr.bf16.mxu0 0
    %1462 = vmatpush1.bf16.msra.mxu0 %v1016
    %1463 = vmatprep.subr.bf16.mxu0 0
    %1464 = vmatpush1.bf16.msra.mxu0 %v1017
    %1465 = vmatprep.mubr.bf16.mxu0 %v361
    %1466 = vmatmul.mubr.bf16.gmra.mrb[0].mxu0 %v360
    %v1467 = vpop.f32.mrb[0].mxu0
    %v1468 = vadd.f32 %v1427, %v1467
    %v1469 = vpop.f32.mrb[0].mxu0
    %v1470 = vpop.f32.mrb[0].mxu0
    %v1471 = vadd.f32 %v1430, %v1470
    %v1472 = vpop.f32.mrb[0].mxu0
    %1473 = vdwg.mxu0
    %v1474 = vld [vmem:[%s3] sm:$0xff]
    %v1475 = vadd.f32 %v1468, %v1474
    %v1476 = vadd.f32 %v1471, %v1474
    %vm1477 = vcmask 261120
    %1478 = vst.msk [vmem:[#allocation2] sm:$0xff] %vm1477, %v1475
    %1479 = vst.msk [vmem:[#allocation2 + $0x8] sm:$0xff] %vm1477, %v1476
    // Predicated region
    $region18: #{patch_embedding_block.1} parent=1 // pred_check
      _
    $region19: #{patch_embedding_block.1} parent=1 // pred_check_branch
      %1481 = sbr.rel (0) target = $region21
    $region20: #{patch_embedding_block.1} parent=1 // pred_region
      %s1483 = ssub.s32 256, 256
      %1484 = vsyncadd [#allocation3], %s1483
      %s1485 = sshll.u32 [#allocation2], 4
      %s1486 = int_to_ptr.vmem [resolvable:$true] %s1485
      %1491 = dma.vmem_to_hbm [thread:$0]  %s1486, 256, %s4, [#allocation3], 128, 128, 8
    $region21: #{patch_embedding_block.1} parent=1 // pred_fallthru
      _
    // Predicated region
    $region22: #{patch_embedding_block.1} parent=1 // pred_check
      _
    $region23: #{patch_embedding_block.1} parent=1 // pred_check_branch
      %1493 = sbr.rel (0) target = $region25
    $region24: #{patch_embedding_block.1} parent=1 // pred_region
      %1494 = dma.done [#allocation3], 256
    $region25: #{patch_embedding_block.1} parent=1 // pred_fallthru
      _
    %1495 = vsyncpa [#allocation3], 1

</llo_original>
